<compile_context>
chip_gen: v7x
topology: tpu7x:2x2x1
jax: 0.10.0
libtpu: 0.0.40
codegen_flags: <defaults>
</compile_context>

<pallas_src>
import jax
import jax.numpy as jnp
from jax.experimental import pallas as pl
from jax.experimental.pallas import tpu as pltpu

BN_EPS = 1e-5


def _fused_branch_kernel(x_ref, w_ref, gamma_ref, beta_ref, o_ref):
    """One (branch, C_out-tile) grid step: Linear + BatchNorm1d(train) + ReLU.

    x_ref:     (1, B, C_in)   bf16 input features for this branch
    w_ref:     (1, C_in, tn)  bf16 weight tile (pre-transposed)
    gamma_ref: (1, 1, tn)     f32 BN scale tile
    beta_ref:  (1, 1, tn)     f32 BN shift tile
    o_ref:     (B, tn)        f32 output tile (column half of the fused output)
    """
    x = x_ref[0]                                   # (B, C_in) bf16
    w = w_ref[0]                                   # (C_in, tn) bf16

    # Linear on the MXU: bf16 operands, f32 accumulation.
    y = jnp.dot(x, w, preferred_element_type=jnp.float32)     # (B, tn) f32

    # BatchNorm1d (training mode): biased variance over the batch axis.
    # Two-pass (y - mean) variance kept for numerical stability.
    mean = jnp.mean(y, axis=0, keepdims=True)                  # (1, tn)
    centered = y - mean
    var = jnp.mean(centered * centered, axis=0, keepdims=True)  # (1, tn)

    # Fold BN affine into a single scale/shift pass, then ReLU.
    scale = gamma_ref[0] * jax.lax.rsqrt(var + BN_EPS)          # (1, tn)
    out = jnp.maximum(centered * scale + beta_ref[0], 0.0)      # (B, tn)
    o_ref[...] = out.astype(o_ref.dtype)


def fused_feature_fusion(x_stacked, w_stacked, gamma_stacked, beta_stacked):
    """Single pallas_call computing both branches into one (B, 2*C_out) output.

    x_stacked:     (2, B, C_in)    [branch 0 = rgb, branch 1 = pred]
    w_stacked:     (2, C_in, C_out)
    gamma_stacked: (2, 1, C_out)
    beta_stacked:  (2, 1, C_out)
    """
    _, B, C_in = x_stacked.shape
    C_out = w_stacked.shape[2]

    # Tile the output-feature axis in lane-dense 128-wide tiles when possible.
    tn = 128 if C_out % 128 == 0 else C_out
    n_j = C_out // tn
    grid = (2, n_j)  # (branch, C_out tile)

    return pl.pallas_call(
        _fused_branch_kernel,
        out_shape=jax.ShapeDtypeStruct((B, 2 * C_out), jnp.float32),
        grid_spec=pltpu.PrefetchScalarGridSpec(
            num_scalar_prefetch=0,
            grid=grid,
            in_specs=[
                pl.BlockSpec((1, B, C_in), lambda b, j: (b, 0, 0)),
                pl.BlockSpec((1, C_in, tn), lambda b, j: (b, 0, j)),
                pl.BlockSpec((1, 1, tn), lambda b, j: (b, 0, j)),
                pl.BlockSpec((1, 1, tn), lambda b, j: (b, 0, j)),
            ],
            # Branch b, tile j -> column block (b * n_j + j) of the fused output.
            out_specs=pl.BlockSpec((B, tn), lambda b, j: (0, b * n_j + j)),
        ),
        compiler_params=pltpu.CompilerParams(
            dimension_semantics=("parallel", "parallel"),
            vmem_limit_bytes=64 * 1024 * 1024,
        ),
    )(x_stacked, w_stacked, gamma_stacked, beta_stacked)


class FeatureFusionModuleParams:
    """Deterministic synthetic parameters matching the torch module shapes."""

    def __init__(self, key, C1, C2, C_out):
        k1, k2, k3, k4 = jax.random.split(key, 4)
        # torch Linear weight is (C_out, C_in); store transposed (C_in, C_out).
        self.w_rgb_t = (jax.random.normal(k1, (C2, C_out), jnp.float32)
                        * (1.0 / jnp.sqrt(C2)))
        self.w_pred_t = (jax.random.normal(k2, (C1, C_out), jnp.float32)
                         * (1.0 / jnp.sqrt(C1)))
        # BatchNorm1d affine params (kept non-trivial so BN actually matters).
        self.gamma_rgb = 1.0 + 0.1 * jax.random.normal(k3, (1, C_out), jnp.float32)
        self.beta_rgb = 0.1 * jnp.arange(C_out, dtype=jnp.float32).reshape(1, C_out) / C_out
        self.gamma_pred = 1.0 + 0.1 * jax.random.normal(k4, (1, C_out), jnp.float32)
        self.beta_pred = -0.05 * jnp.ones((1, C_out), jnp.float32)


def feature_fusion_forward(params, pred, rgb):
    """Equivalent of FeatureFusionModule.forward (training-mode BN).

    Output column order matches torch.cat([rgb, pred], dim=1).
    """
    # TODO(synk): the torch branch `nn.Upsample(rgb.size()[1:])` for mismatched
    # trailing shapes is not implemented — with 2-D (N, C) inputs that branch
    # errors in PyTorch itself, so we require pred.shape[1:] == rgb.shape[1:]
    # (i.e. C1 == C2), which also enables the stacked (2, B, C_in) layout.
    assert pred.shape[1:] == rgb.shape[1:], "mismatched trailing dims unsupported"

    # bf16 MXU operands (f32 accumulation happens inside the kernel).
    x_stacked = jnp.stack([rgb, pred], axis=0).astype(jnp.bfloat16)          # (2,B,C_in)
    w_stacked = jnp.stack([params.w_rgb_t, params.w_pred_t], axis=0).astype(jnp.bfloat16)
    gamma_stacked = jnp.stack([params.gamma_rgb, params.gamma_pred], axis=0)  # (2,1,C_out)
    beta_stacked = jnp.stack([params.beta_rgb, params.beta_pred], axis=0)     # (2,1,C_out)

    return fused_feature_fusion(x_stacked, w_stacked, gamma_stacked, beta_stacked)


def _reference_forward(params, pred, rgb):
    """Pure-JAX reference for correctness checking (same bf16 matmul, f32 BN)."""
    def branch(x, w_t, gamma, beta):
        y = jnp.dot(x.astype(jnp.bfloat16), w_t.astype(jnp.bfloat16),
                    preferred_element_type=jnp.float32)
        mean = jnp.mean(y, axis=0, keepdims=True)
        var = jnp.mean((y - mean) ** 2, axis=0, keepdims=True)
        y_hat = (y - mean) * jax.lax.rsqrt(var + BN_EPS)
        return jnp.maximum(y_hat * gamma + beta, 0.0)

    rgb_out = branch(rgb, params.w_rgb_t, params.gamma_rgb, params.beta_rgb)
    pred_out = branch(pred, params.w_pred_t, params.gamma_pred, params.beta_pred)
    return jnp.concatenate([rgb_out, pred_out], axis=1)


if __name__ == "__main__":
    key = jax.random.PRNGKey(0)
    k_params, k_pred, k_rgb = jax.random.split(key, 3)

    # Small shapes: B=8, C1=C2=32, C_out=128 (lane-dense output: 2*C_out = 256).
    B, C1, C2, C_out = 8, 32, 32, 128
    params = FeatureFusionModuleParams(k_params, C1, C2, C_out)

    pred = jax.random.normal(k_pred, (B, C1), jnp.float32)
    rgb = jax.random.normal(k_rgb, (B, C2), jnp.float32)

    out = feature_fusion_forward(params, pred, rgb)
    out = jax.block_until_ready(out)

    ref = _reference_forward(params, pred, rgb)
    assert out.shape == (B, 2 * C_out), out.shape
    assert jnp.allclose(out, ref, atol=1e-3, rtol=1e-3), "mismatch vs reference"

    print("KERNEL_OK")
</pallas_src>

<mosaic_0001>
module attributes {stable_mosaic.version = 11 : i64} {
  func.func @_fused_branch_kernel(%arg0: i32, %arg1: i32, %arg2: memref<1x8x32xbf16, #tpu.memory_space<vmem>>, %arg3: memref<1x32x128xbf16, #tpu.memory_space<vmem>>, %arg4: memref<1x1x128xf32, #tpu.memory_space<vmem>>, %arg5: memref<1x1x128xf32, #tpu.memory_space<vmem>>, %arg6: memref<8x128xf32, #tpu.memory_space<vmem>>) attributes {dimension_semantics = [#tpu.dimension_semantics<parallel>, #tpu.dimension_semantics<parallel>], iteration_bounds = array<i64: 2, 1>, scalar_prefetch = 0 : i64, scratch_operands = 0 : i64, tpu.core_type = #tpu.core_type<tc>, window_params = [{transform_indices = @transform_0, window_bounds = array<i64: 1, 8, 32>}, {transform_indices = @transform_1, window_bounds = array<i64: 1, 32, 128>}, {transform_indices = @transform_2, window_bounds = array<i64: 1, 1, 128>}, {transform_indices = @transform_3, window_bounds = array<i64: 1, 1, 128>}, {transform_indices = @transform_4, window_bounds = array<i64: 8, 128>}]} {
    %c0 = arith.constant 0 : index
    %c0_0 = arith.constant 0 : index
    %c0_1 = arith.constant 0 : index
    %0 = vector.load %arg2[%c0, %c0_0, %c0_1] : memref<1x8x32xbf16, #tpu.memory_space<vmem>>, vector<1x8x32xbf16>
    %1 = vector.shape_cast %0 : vector<1x8x32xbf16> to vector<8x32xbf16>
    %c0_2 = arith.constant 0 : index
    %c0_3 = arith.constant 0 : index
    %c0_4 = arith.constant 0 : index
    %2 = vector.load %arg3[%c0_2, %c0_3, %c0_4] : memref<1x32x128xbf16, #tpu.memory_space<vmem>>, vector<1x32x128xbf16>
    %3 = vector.shape_cast %2 : vector<1x32x128xbf16> to vector<32x128xbf16>
    %cst = arith.constant dense<0.000000e+00> : vector<8x128xf32>
    %4 = tpu.matmul %1, %3, %cst {dimension_numbers = #tpu.dot_dimension_numbers<[1], [0], [0], [1], [0, 0, 1, 1], [], []>} : vector<8x32xbf16>, vector<32x128xbf16>, vector<8x128xf32> -> vector<8x128xf32>
    %cst_5 = arith.constant dense<0.000000e+00> : vector<128xf32>
    %5 = vector.multi_reduction <add>, %4, %cst_5 [0] : vector<8x128xf32> to vector<128xf32>
    %6 = vector.shape_cast %5 : vector<128xf32> to vector<1x128xf32>
    %cst_6 = arith.constant 8.000000e+00 : f32
    %7 = vector.broadcast %cst_6 : f32 to vector<1x128xf32>
    %8 = arith.divf %6, %7 : vector<1x128xf32>
    %9 = vector.broadcast %8 : vector<1x128xf32> to vector<8x128xf32>
    %10 = arith.subf %4, %9 : vector<8x128xf32>
    %11 = arith.mulf %10, %10 : vector<8x128xf32>
    %cst_7 = arith.constant dense<0.000000e+00> : vector<128xf32>
    %12 = vector.multi_reduction <add>, %11, %cst_7 [0] : vector<8x128xf32> to vector<128xf32>
    %13 = vector.shape_cast %12 : vector<128xf32> to vector<1x128xf32>
    %cst_8 = arith.constant 8.000000e+00 : f32
    %14 = vector.broadcast %cst_8 : f32 to vector<1x128xf32>
    %15 = arith.divf %13, %14 : vector<1x128xf32>
    %c0_9 = arith.constant 0 : index
    %c0_10 = arith.constant 0 : index
    %c0_11 = arith.constant 0 : index
    %16 = vector.load %arg4[%c0_9, %c0_10, %c0_11] : memref<1x1x128xf32, #tpu.memory_space<vmem>>, vector<1x1x128xf32>
    %17 = vector.shape_cast %16 : vector<1x1x128xf32> to vector<1x128xf32>
    %cst_12 = arith.constant 9.99999974E-6 : f32
    %18 = vector.broadcast %cst_12 : f32 to vector<1x128xf32>
    %19 = arith.addf %15, %18 : vector<1x128xf32>
    %20 = math.rsqrt %19 : vector<1x128xf32>
    %21 = arith.mulf %17, %20 : vector<1x128xf32>
    %22 = vector.broadcast %21 : vector<1x128xf32> to vector<8x128xf32>
    %23 = arith.mulf %10, %22 : vector<8x128xf32>
    %c0_13 = arith.constant 0 : index
    %c0_14 = arith.constant 0 : index
    %c0_15 = arith.constant 0 : index
    %24 = vector.load %arg5[%c0_13, %c0_14, %c0_15] : memref<1x1x128xf32, #tpu.memory_space<vmem>>, vector<1x1x128xf32>
    %25 = vector.shape_cast %24 : vector<1x1x128xf32> to vector<1x128xf32>
    %26 = vector.broadcast %25 : vector<1x128xf32> to vector<8x128xf32>
    %27 = arith.addf %23, %26 : vector<8x128xf32>
    %cst_16 = arith.constant 0.000000e+00 : f32
    %28 = vector.broadcast %cst_16 : f32 to vector<8x128xf32>
    %29 = arith.maximumf %27, %28 : vector<8x128xf32>
    %c0_17 = arith.constant 0 : index
    %c0_18 = arith.constant 0 : index
    %30 = vector.load %arg6[%c0_17, %c0_18] : memref<8x128xf32, #tpu.memory_space<vmem>>, vector<8x128xf32>
    tpu.vector_store %arg6[%c0_17, %c0_18], %29 {strides = array<i32>} : memref<8x128xf32, #tpu.memory_space<vmem>>, vector<8x128xf32>,
    return
  }
  func.func @transform_0(%arg0: i32, %arg1: i32) -> (i32, i32, i32) {
    %c0_i32 = arith.constant 0 : i32
    %c0_i32_0 = arith.constant 0 : i32
    %c0_i32_1 = arith.constant 0 : i32
    return %arg0, %c0_i32, %c0_i32_0 : i32, i32, i32
  }
  func.func @transform_1(%arg0: i32, %arg1: i32) -> (i32, i32, i32) {
    %c0_i32 = arith.constant 0 : i32
    %c0_i32_0 = arith.constant 0 : i32
    return %arg0, %c0_i32, %arg1 : i32, i32, i32
  }
  func.func @transform_2(%arg0: i32, %arg1: i32) -> (i32, i32, i32) {
    %c0_i32 = arith.constant 0 : i32
    %c0_i32_0 = arith.constant 0 : i32
    return %arg0, %c0_i32, %arg1 : i32, i32, i32
  }
  func.func @transform_3(%arg0: i32, %arg1: i32) -> (i32, i32, i32) {
    %c0_i32 = arith.constant 0 : i32
    %c0_i32_0 = arith.constant 0 : i32
    return %arg0, %c0_i32, %arg1 : i32, i32, i32
  }
  func.func @transform_4(%arg0: i32, %arg1: i32) -> (i32, i32) {
    %c1_i32 = arith.constant 1 : i32
    %0 = arith.muli %arg0, %c1_i32 : i32
    %1 = arith.addi %0, %arg1 : i32
    %c0_i32 = arith.constant 0 : i32
    %c0_i32_0 = arith.constant 0 : i32
    return %c0_i32, %1 : i32, i32
  }
}

</mosaic_0001>

<llo_original>
// kernel: tpu_custom_call.1
$region0: #{tpu_custom_call.1}
  #allocation0 [shape = 'u32[]', space=smem, size = 0x4, offset = 0x4, fixed_abs, tag = 'smem constant byte address 0x4 - core index']
  #allocation1 [shape = 'u32[144,128]{1,0:T(1,128)}', space=vmem, size = 0x12000, scoped, tag = 'internal scratch']
  %s0 = inlined_call_operand.hbm [shape: bf16[2,8,32], index: 0, kind: input, shape index: {}]
  %s1 = inlined_call_operand.hbm [shape: bf16[2,32,128], index: 1, kind: input, shape index: {}]
  %s2 = inlined_call_operand.hbm [shape: f32[2,1,128], index: 2, kind: input, shape index: {}]
  %s3 = inlined_call_operand.hbm [shape: f32[2,1,128], index: 3, kind: input, shape index: {}]
  %s4 = inlined_call_operand.hbm [shape: f32[8,256], index: 4, kind: output, shape index: {}]
  %s5 = sld [smem:[#allocation0]]
  $region65: #{tpu_custom_call.1} parent=0
    _
  %s7 = ssub.s32 1, %s5
  %s8 = scalar_select 0, %s7, %s5
  $region1: #{tpu_custom_call.1} parent=0
    #allocation2 [shape = 'u8[4096]{0}', space=vmem, size = 0x1000, scoped, tag = 'input window, operand 0']
    #allocation3 [shape = 's32[2]{0}', space=sflag, size = 0x8, scoped, tag = 'scoped memory for tpu_custom_call.1']
    #allocation4 [shape = 's32[2]{0}', space=sflag, size = 0x8, scoped, tag = 'scoped memory for tpu_custom_call.1']
    #allocation5 [shape = 'u8[16384]{0}', space=vmem, size = 0x4000, scoped, tag = 'input window, operand 1']
    #allocation6 [shape = 's32[2]{0}', space=sflag, size = 0x8, scoped, tag = 'scoped memory for tpu_custom_call.1']
    #allocation7 [shape = 'u8[1024]{0}', space=vmem, size = 0x400, scoped, tag = 'input window, operand 2']
    #allocation8 [shape = 'u8[1024]{0}', space=vmem, size = 0x400, scoped, tag = 'input window, operand 3']
    #allocation9 [shape = 's32[2]{0}', space=sflag, size = 0x8, scoped, tag = 'scoped memory for tpu_custom_call.1']
    #allocation10 [shape = 'u8[8192]{0}', space=vmem, size = 0x2000, scoped, tag = 'output window, operand 0']
    %9 = vsyncpa [#allocation3], 0
    %s10 = scalar_lea.sflag [#allocation3], 1
    %11 = vsyncpa %s10, 0
    %12 = vsyncpa [#allocation6], 0
    %s13 = scalar_lea.sflag [#allocation6], 1
    %14 = vsyncpa %s13, 0
    %15 = vsyncpa [#allocation9], 0
    %s16 = scalar_lea.sflag [#allocation9], 1
    %17 = vsyncpa %s16, 0
    %18 = vsyncpa [#allocation4], 0
    %s19 = scalar_lea.sflag [#allocation4], 1
    %20 = vsyncpa %s19, 0
    loop: start=0, step=1, limit=4
    $region2: #{tpu_custom_call.1} parent=1 // loop_pre_header
      _
    $region3: #{tpu_custom_call.1} parent=1 // loop_header
      %s22 = sphi 0, %s26
      %p23 = scmp.ge.s32.totalorder %s22, 4
      %s29 = sphi 0, %s41
      %s30 = sphi 0, %s37
      %s31 = sphi 0, %s29
      %s32 = sphi 0, %s30
      %s33 = sphi 0, %s31
      %s34 = sphi 0, %s32
      %s44 = sphi 0, %s46
      %s47 = sphi 0, %s44
      %s48 = sphi 0, %s47
      %s64 = sphi 0, %s48
      %s72 = sphi 0, %s74
      %s75 = sphi 0, %s72
      %s76 = sphi 0, %s75
      %s92 = sphi 0, %s76
      %s100 = sphi 0, %s102
      %s103 = sphi 0, %s100
      %s104 = sphi 0, %s103
      %s120 = sphi 0, %s104
      %s128 = sphi 0, %s130
      %s131 = sphi 0, %s128
      %s132 = sphi 0, %s131
      %s148 = sphi 0, %s132
      %s156 = sphi 0, %s158
      %s159 = sphi 0, %s156
      %s160 = sphi 0, %s159
      %s176 = sphi 0, %s160
    $region4: #{tpu_custom_call.1} parent=1 // loop_header_branch
      %25 = sbr.rel (%p23) target = $region8
    $region5: #{tpu_custom_call.1} parent=1 // loop_body
      %s27 = ssub.s32 %s22, 1
      %s28 = ssub.s32 %s22, 2
      %s35 = sadd.s32 1, %s30
      %p36 = scmp.ge.s32.totalorder %s35, 1
      %s37 = scalar_select %p36, 0, %s35
      %s38 = sadd.s32 1, %s29
      %s39 = scalar_select %p36, %s38, %s29
      %p40 = scmp.ge.s32.totalorder %s39, 2
      %s41 = scalar_select %p40, 0, %s39
      %s42 = ssub.s32 %s29, %s41
      %p43 = scmp.eq.s32.totalorder %s42, 0
      %s45 = sadd.s32 %s44, 1
      %s46 = scalar_select %p43, %s44, %s45
      %p49 = pneg %p43
      %p50 = scmp.eq.s32.totalorder %s22, 1
      %p51 = por %p49, %p50
      %p52 = scmp.ne.s32.totalorder %s44, %s47
      %p53 = scmp.eq.s32.totalorder %s22, 0
      %p54 = por %p52, %p53
      %p55 = scmp.ne.s32.totalorder %s44, %s47
      %p56 = scmp.eq.s32.totalorder %s27, 1
      %p57 = por %p55, %p56
      %p58 = scmp.ne.s32.totalorder %s47, %s48
      %p59 = scmp.eq.s32.totalorder %s27, 0
      %p60 = por %p58, %p59
      %p61 = scmp.ne.s32.totalorder %s47, %s48
      %p62 = scmp.eq.s32.totalorder %s28, 1
      %p63 = por %p61, %p62
      %p65 = scmp.ne.s32.totalorder %s48, %s64
      %p66 = scmp.eq.s32.totalorder %s28, 0
      %p67 = por %p65, %p66
      %s68 = ssub.s32 %s29, %s41
      %s69 = ssub.s32 %s30, %s37
      %s70 = sor.u32 %s68, %s69
      %p71 = scmp.eq.s32.totalorder %s70, 0
      %s73 = sadd.s32 %s72, 1
      %s74 = scalar_select %p71, %s72, %s73
      %p77 = pneg %p71
      %p78 = scmp.eq.s32.totalorder %s22, 1
      %p79 = por %p77, %p78
      %p80 = scmp.ne.s32.totalorder %s72, %s75
      %p81 = scmp.eq.s32.totalorder %s22, 0
      %p82 = por %p80, %p81
      %p83 = scmp.ne.s32.totalorder %s72, %s75
      %p84 = scmp.eq.s32.totalorder %s27, 1
      %p85 = por %p83, %p84
      %p86 = scmp.ne.s32.totalorder %s75, %s76
      %p87 = scmp.eq.s32.totalorder %s27, 0
      %p88 = por %p86, %p87
      %p89 = scmp.ne.s32.totalorder %s75, %s76
      %p90 = scmp.eq.s32.totalorder %s28, 1
      %p91 = por %p89, %p90
      %p93 = scmp.ne.s32.totalorder %s76, %s92
      %p94 = scmp.eq.s32.totalorder %s28, 0
      %p95 = por %p93, %p94
      %s96 = ssub.s32 %s29, %s41
      %s97 = ssub.s32 %s30, %s37
      %s98 = sor.u32 %s96, %s97
      %p99 = scmp.eq.s32.totalorder %s98, 0
      %s101 = sadd.s32 %s100, 1
      %s102 = scalar_select %p99, %s100, %s101
      %p105 = pneg %p99
      %p106 = scmp.eq.s32.totalorder %s22, 1
      %p107 = por %p105, %p106
      %p108 = scmp.ne.s32.totalorder %s100, %s103
      %p109 = scmp.eq.s32.totalorder %s22, 0
      %p110 = por %p108, %p109
      %p111 = scmp.ne.s32.totalorder %s100, %s103
      %p112 = scmp.eq.s32.totalorder %s27, 1
      %p113 = por %p111, %p112
      %p114 = scmp.ne.s32.totalorder %s103, %s104
      %p115 = scmp.eq.s32.totalorder %s27, 0
      %p116 = por %p114, %p115
      %p117 = scmp.ne.s32.totalorder %s103, %s104
      %p118 = scmp.eq.s32.totalorder %s28, 1
      %p119 = por %p117, %p118
      %p121 = scmp.ne.s32.totalorder %s104, %s120
      %p122 = scmp.eq.s32.totalorder %s28, 0
      %p123 = por %p121, %p122
      %s124 = ssub.s32 %s29, %s41
      %s125 = ssub.s32 %s30, %s37
      %s126 = sor.u32 %s124, %s125
      %p127 = scmp.eq.s32.totalorder %s126, 0
      %s129 = sadd.s32 %s128, 1
      %s130 = scalar_select %p127, %s128, %s129
      %p133 = pneg %p127
      %p134 = scmp.eq.s32.totalorder %s22, 1
      %p135 = por %p133, %p134
      %p136 = scmp.ne.s32.totalorder %s128, %s131
      %p137 = scmp.eq.s32.totalorder %s22, 0
      %p138 = por %p136, %p137
      %p139 = scmp.ne.s32.totalorder %s128, %s131
      %p140 = scmp.eq.s32.totalorder %s27, 1
      %p141 = por %p139, %p140
      %p142 = scmp.ne.s32.totalorder %s131, %s132
      %p143 = scmp.eq.s32.totalorder %s27, 0
      %p144 = por %p142, %p143
      %p145 = scmp.ne.s32.totalorder %s131, %s132
      %p146 = scmp.eq.s32.totalorder %s28, 1
      %p147 = por %p145, %p146
      %p149 = scmp.ne.s32.totalorder %s132, %s148
      %p150 = scmp.eq.s32.totalorder %s28, 0
      %p151 = por %p149, %p150
      %s152 = sadd.s32 %s29, %s30
      %s153 = sadd.s32 %s41, %s37
      %s154 = ssub.s32 %s152, %s153
      %p155 = scmp.eq.s32.totalorder %s154, 0
      %s157 = sadd.s32 %s156, 1
      %s158 = scalar_select %p155, %s156, %s157
      %p161 = pneg %p155
      %p162 = scmp.eq.s32.totalorder %s22, 1
      %p163 = por %p161, %p162
      %p164 = scmp.ne.s32.totalorder %s156, %s159
      %p165 = scmp.eq.s32.totalorder %s22, 0
      %p166 = por %p164, %p165
      %p167 = scmp.ne.s32.totalorder %s156, %s159
      %p168 = scmp.eq.s32.totalorder %s27, 1
      %p169 = por %p167, %p168
      %p170 = scmp.ne.s32.totalorder %s159, %s160
      %p171 = scmp.eq.s32.totalorder %s27, 0
      %p172 = por %p170, %p171
      %p173 = scmp.ne.s32.totalorder %s159, %s160
      %p174 = scmp.eq.s32.totalorder %s28, 1
      %p175 = por %p173, %p174
      %p177 = scmp.ne.s32.totalorder %s160, %s176
      %p178 = scmp.eq.s32.totalorder %s28, 0
      %p179 = por %p177, %p178
      %p180 = scmp.le.s32.totalorder 1, %s22
      %p181 = scmp.lt.s32.totalorder %s22, 3
      %p182 = pnand %p180, %p181
      %p183 = pneg %p182
      // Predicated region
      $region9: #{tpu_custom_call.1} parent=5 // pred_check
        _
      $region10: #{tpu_custom_call.1} parent=5 // pred_check_branch
        %185 = sbr.rel (%p182) target = $region12
      $region11: #{tpu_custom_call.1} parent=5 // pred_region
        %s186 = ssub.s32 %s22, 1
      $region12: #{tpu_custom_call.1} parent=5 // pred_fallthru
        _
      %p187 = scmp.lt.s32.totalorder %s22, 2
      // Predicated region
      $region13: #{tpu_custom_call.1} parent=5 // pred_check
        %p188 = pneg %p187
      $region14: #{tpu_custom_call.1} parent=5 // pred_check_branch
        %190 = sbr.rel (%p188) target = $region16
      $region15: #{tpu_custom_call.1} parent=5 // pred_region
        // Predicated region
        $region17: #{tpu_custom_call.1} parent=15 // pred_check
          %p191 = pneg %p54
        $region18: #{tpu_custom_call.1} parent=15 // pred_check_branch
          %193 = sbr.rel (%p191) target = $region20
        $region19: #{tpu_custom_call.1} parent=15 // pred_region
          %s194 = sand.u32 %s44, 1
          %s195 = scalar_lea.sflag [#allocation3], %s194
          %s196 = sand.u32 %s44, 1
          %s197 = smul.addr %s196, 4
          %s198 = scalar_lea.vmem [#allocation2], %s197
          %s200 = ssub.s32 64, 64
          %201 = vsyncadd %s195, %s200
          %s202 = smul.addr %s29, 64
          %s203 = scalar_lea.hbm %s0, %s202
          %s205 = sshll.u32 %s198, 4
          %s206 = int_to_ptr.vmem [resolvable:$true] %s205
          %208 = dma.hbm_to_vmem [thread:$0]  %s203, 64, %s206, %s195
        $region20: #{tpu_custom_call.1} parent=15 // pred_fallthru
          _
        // Predicated region
        $region21: #{tpu_custom_call.1} parent=15 // pred_check
          %p209 = pneg %p82
        $region22: #{tpu_custom_call.1} parent=15 // pred_check_branch
          %211 = sbr.rel (%p209) target = $region24
        $region23: #{tpu_custom_call.1} parent=15 // pred_region
          %s212 = sand.u32 %s22, 1
          %s213 = scalar_lea.sflag [#allocation6], %s212
          %s214 = sand.u32 %s72, 1
          %s215 = smul.addr %s214, 16
          %s216 = scalar_lea.vmem [#allocation5], %s215
          %s218 = ssub.s32 256, 256
          %219 = vsyncadd %s213, %s218
          %s220 = smul.addr %s29, 4
          %s221 = sadd.s32 %s30, %s220
          %s222 = smul.addr %s221, 64
          %s223 = scalar_lea.hbm %s1, %s222
          %s224 = sshll.u32 %s216, 4
          %s225 = int_to_ptr.vmem [resolvable:$true] %s224
          %230 = dma.hbm_to_vmem [thread:$0]  %s223, 256, %s225, %s213, 64, 64, 4
        $region24: #{tpu_custom_call.1} parent=15 // pred_fallthru
          _
        // Predicated region
        $region25: #{tpu_custom_call.1} parent=15 // pred_check
          %p231 = pneg %p110
        $region26: #{tpu_custom_call.1} parent=15 // pred_check_branch
          %233 = sbr.rel (%p231) target = $region28
        $region27: #{tpu_custom_call.1} parent=15 // pred_region
          %s234 = sand.u32 %s22, 1
          %s235 = scalar_lea.sflag [#allocation6], %s234
          %s236 = sand.u32 %s100, 1
          %s237 = scalar_lea.vmem [#allocation7], %s236
          %s239 = ssub.s32 16, 16
          %240 = vsyncadd %s235, %s239
          %s241 = sadd.s32 %s30, %s29
          %s242 = smul.addr %s241, 16
          %s243 = scalar_lea.hbm %s2, %s242
          %s245 = sshll.u32 %s237, 4
          %s246 = int_to_ptr.vmem [resolvable:$true] %s245
          %248 = dma.hbm_to_vmem [thread:$0]  %s243, 16, %s246, %s235
        $region28: #{tpu_custom_call.1} parent=15 // pred_fallthru
          _
        // Predicated region
        $region29: #{tpu_custom_call.1} parent=15 // pred_check
          %p249 = pneg %p138
        $region30: #{tpu_custom_call.1} parent=15 // pred_check_branch
          %251 = sbr.rel (%p249) target = $region32
        $region31: #{tpu_custom_call.1} parent=15 // pred_region
          %s252 = sand.u32 %s128, 1
          %s253 = scalar_lea.sflag [#allocation9], %s252
          %s254 = sand.u32 %s128, 1
          %s255 = scalar_lea.vmem [#allocation8], %s254
          %s257 = ssub.s32 16, 16
          %258 = vsyncadd %s253, %s257
          %s259 = sadd.s32 %s30, %s29
          %s260 = smul.addr %s259, 16
          %s261 = scalar_lea.hbm %s3, %s260
          %s263 = sshll.u32 %s255, 4
          %s264 = int_to_ptr.vmem [resolvable:$true] %s263
          %266 = dma.hbm_to_vmem [thread:$0]  %s261, 16, %s264, %s253
        $region32: #{tpu_custom_call.1} parent=15 // pred_fallthru
          _
      $region16: #{tpu_custom_call.1} parent=5 // pred_fallthru
        _
      %p267 = scmp.le.s32.totalorder 1, %s22
      %p268 = scmp.lt.s32.totalorder %s22, 3
      %p269 = pnand %p267, %p268
      %p270 = pneg %p269
      // Predicated region
      $region33: #{tpu_custom_call.1} parent=5 // pred_check
        _
      $region34: #{tpu_custom_call.1} parent=5 // pred_check_branch
        %272 = sbr.rel (%p269) target = $region36
      $region35: #{tpu_custom_call.1} parent=5 // pred_region
        %s273 = ssub.s32 %s22, 1
        %s274 = sand.u32 %s47, 1
        %s275 = scalar_lea.sflag [#allocation3], %s274
        %s276 = sand.u32 %s47, 1
        %s277 = smul.addr %s276, 4
        %s278 = scalar_lea.vmem [#allocation2], %s277
        // Predicated region
        $region37: #{tpu_custom_call.1} parent=35 // pred_check
          %p279 = pneg %p60
        $region38: #{tpu_custom_call.1} parent=35 // pred_check_branch
          %281 = sbr.rel (%p279) target = $region40
        $region39: #{tpu_custom_call.1} parent=35 // pred_region
          %282 = dma.done %s275, 64
        $region40: #{tpu_custom_call.1} parent=35 // pred_fallthru
          _
        %s283 = sand.u32 %s27, 1
        %s284 = scalar_lea.sflag [#allocation6], %s283
        %s285 = sand.u32 %s75, 1
        %s286 = smul.addr %s285, 16
        %s287 = scalar_lea.vmem [#allocation5], %s286
        // Predicated region
        $region41: #{tpu_custom_call.1} parent=35 // pred_check
          %p288 = pneg %p88
        $region42: #{tpu_custom_call.1} parent=35 // pred_check_branch
          %290 = sbr.rel (%p288) target = $region44
        $region43: #{tpu_custom_call.1} parent=35 // pred_region
          %291 = dma.done %s284, 256
        $region44: #{tpu_custom_call.1} parent=35 // pred_fallthru
          _
        %s292 = sand.u32 %s27, 1
        %s293 = scalar_lea.sflag [#allocation6], %s292
        %s294 = sand.u32 %s103, 1
        %s295 = scalar_lea.vmem [#allocation7], %s294
        // Predicated region
        $region45: #{tpu_custom_call.1} parent=35 // pred_check
          %p296 = pneg %p116
        $region46: #{tpu_custom_call.1} parent=35 // pred_check_branch
          %298 = sbr.rel (%p296) target = $region48
        $region47: #{tpu_custom_call.1} parent=35 // pred_region
          %299 = dma.done %s293, 16
        $region48: #{tpu_custom_call.1} parent=35 // pred_fallthru
          _
        %s300 = sand.u32 %s131, 1
        %s301 = scalar_lea.sflag [#allocation9], %s300
        %s302 = sand.u32 %s131, 1
        %s303 = scalar_lea.vmem [#allocation8], %s302
        // Predicated region
        $region49: #{tpu_custom_call.1} parent=35 // pred_check
          %p304 = pneg %p144
        $region50: #{tpu_custom_call.1} parent=35 // pred_check_branch
          %306 = sbr.rel (%p304) target = $region52
        $region51: #{tpu_custom_call.1} parent=35 // pred_region
          %307 = dma.done %s301, 16
        $region52: #{tpu_custom_call.1} parent=35 // pred_fallthru
          _
        %s308 = sand.u32 %s47, 1
        %s309 = scalar_lea.sflag [#allocation3], %s308
        %s310 = sand.u32 %s47, 1
        %s311 = smul.addr %s310, 4
        %s312 = scalar_lea.vmem [#allocation2], %s311
        %p313 = pneg %p60
        %p314 = pneg %p57
        %s315 = sand.u32 %s27, 1
        %s316 = scalar_lea.sflag [#allocation6], %s315
        %s317 = sand.u32 %s75, 1
        %s318 = smul.addr %s317, 16
        %s319 = scalar_lea.vmem [#allocation5], %s318
        %p320 = pneg %p88
        %p321 = pneg %p85
        %s322 = sand.u32 %s27, 1
        %s323 = scalar_lea.sflag [#allocation6], %s322
        %s324 = sand.u32 %s103, 1
        %s325 = scalar_lea.vmem [#allocation7], %s324
        %p326 = pneg %p116
        %p327 = pneg %p113
        %s328 = sand.u32 %s131, 1
        %s329 = scalar_lea.sflag [#allocation9], %s328
        %s330 = sand.u32 %s131, 1
        %s331 = scalar_lea.vmem [#allocation8], %s330
        %p332 = pneg %p144
        %p333 = pneg %p141
        %p334 = pneg %p172
        %p335 = pneg %p169
        %s336 = sand.u32 %s159, 1
        %s337 = scalar_lea.sflag [#allocation4], %s336
        %s338 = sand.u32 %s159, 1
        %s339 = smul.addr %s338, 8
        %s340 = scalar_lea.vmem [#allocation10], %s339
        %s341 = sadd.s32 %s31, %s32
        %v343 = vld [vmem:[%s278] sm:$0xf]
        %v344 = vld [vmem:[%s287] sm:$0xf]
        %v345 = vld [vmem:[%s287 + $0x4] sm:$0xf]
        %v346 = vld [vmem:[%s287 + $0x8] sm:$0xf]
        %v347 = vld [vmem:[%s287 + $0xc] sm:$0xf]
        %v352 = vunpack.c.l.b16 %v344
        %v353 = vunpack.c.l.b16 %v345
        %v354 = vunpack.c.l.b16 %v346
        %v355 = vunpack.c.l.b16 %v347
        %v356 = vpack.c.b16 %v353, %v352
        %v357 = vpack.c.b16 %v355, %v354
        %vm360 = vcmask 261120
        %v362 = vsel %vm360, %v343, 0
        %364 = vmatprep.subr.bf16.mxu0 0
        %365 = vmatpush1.bf16.msra.mxu0 %v356
        %366 = vmatprep.subr.bf16.mxu0 0
        %367 = vmatpush1.bf16.msra.mxu0 %v357
        %368 = vmatprep.subr.bf16.mxu0 0
        %369 = vmatpush1.bf16.msra.mxu0 0
        %370 = vmatprep.subr.bf16.mxu0 0
        %371 = vmatpush1.bf16.msra.mxu0 0
        %372 = vmatprep.subr.bf16.mxu0 0
        %373 = vmatpush1.bf16.msra.mxu0 0
        %374 = vmatprep.subr.bf16.mxu0 0
        %375 = vmatpush1.bf16.msra.mxu0 0
        %376 = vmatprep.subr.bf16.mxu0 0
        %377 = vmatpush1.bf16.msra.mxu0 0
        %378 = vmatprep.subr.bf16.mxu0 0
        %379 = vmatpush1.bf16.msra.mxu0 0
        %380 = vmatprep.subr.bf16.mxu0 0
        %381 = vmatpush1.bf16.msra.mxu0 0
        %382 = vmatprep.subr.bf16.mxu0 0
        %383 = vmatpush1.bf16.msra.mxu0 0
        %384 = vmatprep.subr.bf16.mxu0 0
        %385 = vmatpush1.bf16.msra.mxu0 0
        %386 = vmatprep.subr.bf16.mxu0 0
        %387 = vmatpush1.bf16.msra.mxu0 0
        %388 = vmatprep.subr.bf16.mxu0 0
        %389 = vmatpush1.bf16.msra.mxu0 0
        %390 = vmatprep.subr.bf16.mxu0 0
        %391 = vmatpush1.bf16.msra.mxu0 0
        %392 = vmatprep.subr.bf16.mxu0 0
        %393 = vmatpush1.bf16.msra.mxu0 0
        %394 = vmatprep.subr.bf16.mxu0 0
        %395 = vmatpush1.bf16.msra.mxu0 0
        %396 = vmatprep.mubr.bf16.mxu0 0
        %397 = vmatmul.mubr.bf16.gmra.mrb[0].mxu0 %v362
        %v398 = vpop.f32.mrb[0].mxu0
        %v399 = vadd.f32 0.0, %v398
        %v400 = vpop.f32.mrb[0].mxu0
        %v401 = vpop.f32.mrb[0].mxu0
        %v402 = vpop.f32.mrb[0].mxu0
        %403 = vdwg.mxu0
        %v404 = vrot.slane %v399, 4
        %v405 = vadd.f32 %v399, %v404
        %v406 = vrot.slane %v405, 2
        %v407 = vadd.f32 %v405, %v406
        %v408 = vrot.slane %v407, 1
        %v409 = vadd.f32 %v407, %v408
        %v410 = vrcp.pop 8.0
        %v411 = vmul.f32 %v409, %v410
        %v412 = vsub.f32 %v399, %v411
        %v413 = vmul.f32 %v412, %v412
        %v414 = vrot.slane %v413, 4
        %v415 = vadd.f32 %v413, %v414
        %v416 = vrot.slane %v415, 2
        %v417 = vadd.f32 %v415, %v416
        %v418 = vrot.slane %v417, 1
        %v419 = vadd.f32 %v417, %v418
        %v420 = vmul.f32 %v419, %v410
        %v421 = vld [vmem:[%s295] sm:$0x1]
        %v422 = vadd.f32 %v420, 1e-05
        %v423 = vrsqrt.pop %v422
        %v424 = vmul.f32 %v421, %v423
        %v426 = vlaneseq
        %v427 = vshrl.u32 %v426, 7
        %v428 = vsub.s32 0, %v427
        %v429 = vrot.slane %v424, %v428
        %v431 = vmul.f32 %v412, %v429
        %v432 = vld [vmem:[%s303] sm:$0x1]
        %v434 = vlaneseq
        %v435 = vshrl.u32 %v434, 7
        %v436 = vsub.s32 0, %v435
        %v437 = vrot.slane %v432, %v436
        %v439 = vadd.f32 %v431, %v437
        %v440 = vmax.f32 %v439, 0.0
        %441 = vst [vmem:[%s340] sm:$0xff] %v440
        %s442 = sand.u32 %s159, 1
        %s443 = scalar_lea.sflag [#allocation4], %s442
        %s444 = sand.u32 %s159, 1
        %s445 = smul.addr %s444, 8
        %s446 = scalar_lea.vmem [#allocation10], %s445
        // Predicated region
        $region53: #{tpu_custom_call.1} parent=35 // pred_check
          %p447 = pneg %p169
        $region54: #{tpu_custom_call.1} parent=35 // pred_check_branch
          %449 = sbr.rel (%p447) target = $region56
        $region55: #{tpu_custom_call.1} parent=35 // pred_region
          %s450 = sadd.s32 %s31, %s32
          %s452 = ssub.s32 128, 128
          %453 = vsyncadd %s443, %s452
          %s454 = smul.addr %s450, 128
          %s455 = scalar_lea.hbm %s4, %s454
          %s457 = sshll.u32 %s446, 4
          %s458 = int_to_ptr.vmem [resolvable:$true] %s457
          %460 = dma.vmem_to_hbm [thread:$0]  %s458, 128, %s455, %s443
        $region56: #{tpu_custom_call.1} parent=35 // pred_fallthru
          _
      $region36: #{tpu_custom_call.1} parent=5 // pred_fallthru
        _
      %p461 = scmp.le.s32.totalorder 2, %s22
      // Predicated region
      $region57: #{tpu_custom_call.1} parent=5 // pred_check
        %p462 = pneg %p461
      $region58: #{tpu_custom_call.1} parent=5 // pred_check_branch
        %464 = sbr.rel (%p462) target = $region60
      $region59: #{tpu_custom_call.1} parent=5 // pred_region
        %s465 = ssub.s32 %s22, 2
        // Predicated region
        $region61: #{tpu_custom_call.1} parent=59 // pred_check
          %p466 = pneg %p175
        $region62: #{tpu_custom_call.1} parent=59 // pred_check_branch
          %468 = sbr.rel (%p466) target = $region64
        $region63: #{tpu_custom_call.1} parent=59 // pred_region
          %s469 = sand.u32 %s160, 1
          %s470 = scalar_lea.sflag [#allocation4], %s469
          %s471 = sand.u32 %s160, 1
          %s472 = smul.addr %s471, 8
          %s473 = scalar_lea.vmem [#allocation10], %s472
          %474 = dma.done %s470, 128
        $region64: #{tpu_custom_call.1} parent=59 // pred_fallthru
          _
      $region60: #{tpu_custom_call.1} parent=5 // pred_fallthru
        _
    $region6: #{tpu_custom_call.1} parent=1 // loop_footer
      %s26 = sadd.s32 1, %s22
    $region7: #{tpu_custom_call.1} parent=1 // loop_footer_branch
      %21 = sbr.rel target = $region3
    $region8: #{tpu_custom_call.1} parent=1 // loop_exit
      _
    %475 = vsyncpa [#allocation3], 1
    %s476 = scalar_lea.sflag [#allocation3], 1
    %477 = vsyncpa %s476, 1
    %478 = vsyncpa [#allocation6], 1
    %s479 = scalar_lea.sflag [#allocation6], 1
    %480 = vsyncpa %s479, 1
    %481 = vsyncpa [#allocation9], 1
    %s482 = scalar_lea.sflag [#allocation9], 1
    %483 = vsyncpa %s482, 1
    %484 = vsyncpa [#allocation4], 1
    %s485 = scalar_lea.sflag [#allocation4], 1
    %486 = vsyncpa %s485, 1

</llo_original>
